<compile_context>
chip_gen: v6e
topology: v6e:2x2x1
jax: 0.10.0
libtpu: 0.0.40
codegen_flags: <defaults>
</compile_context>

<pallas_src>
import numpy as np
import jax
import jax.numpy as jnp
from jax import lax
from jax.experimental import pallas as pl
from jax.experimental.pallas import tpu as pltpu


# ----------------------------- constant matrix builders -----------------------------

def _channel_matrix(h, n):
    """Hm (2n,2n) such that x @ Hm == complex_mul_taps(h, x) for row-vector x."""
    L = h.shape[0] // 2
    Hm = np.zeros((2 * n, 2 * n), np.float32)
    for i in range(n):
        for j in range(min(L, i + 1)):
            Hm[2 * (i - j), 2 * i] += h[2 * j]
            Hm[2 * (i - j) + 1, 2 * i] -= h[2 * j + 1]
            Hm[2 * (i - j) + 1, 2 * i + 1] += h[2 * j]
            Hm[2 * (i - j), 2 * i + 1] += h[2 * j + 1]
    return Hm


def _deconv_matrices(n, L):
    """Constant matrices expressing complex_conv_transpose(h_inv, x) as matmuls."""
    two_n = 2 * n
    # pairwise (-imag, +real) swap:  s = x @ Psw
    Psw = np.zeros((two_n, two_n), np.float32)
    for i in range(n):
        Psw[2 * i + 1, 2 * i] = -1.0
        Psw[2 * i, 2 * i + 1] = 1.0
    # tile x L times along lanes
    Tx = np.zeros((two_n, two_n * L), np.float32)
    for j in range(L):
        for m in range(two_n):
            Tx[m, j * two_n + m] = 1.0
    # broadcast real / imag tap j over its block
    Ar = np.zeros((2 * L, two_n * L), np.float32)
    Ai = np.zeros((2 * L, two_n * L), np.float32)
    for j in range(L):
        Ar[2 * j, j * two_n:(j + 1) * two_n] = 1.0
        Ai[2 * j + 1, j * two_n:(j + 1) * two_n] = 1.0
    # scatter-add each tap's product at its complex offset j
    S = np.zeros((two_n * L, 2 * (n + L - 1)), np.float32)
    for j in range(L):
        for i in range(n):
            S[j * two_n + 2 * i, 2 * (i + j)] = 1.0
            S[j * two_n + 2 * i + 1, 2 * (i + j) + 1] = 1.0
    return Psw, Tx, Ar, Ai, S


# weight / bias slot indices inside the packed slabs
_W1, _W2CAT, _WR1, _WR2, _WACAT, _TXCAT, _SW3, _W4 = range(8)
_B1, _B2CAT, _BR1, _BR2, _BACAT, _B3, _B4 = range(7)

_CH = 128  # lane-chunk width processed per inner iteration


def _round_up(a, b):
    return -(-a // b) * b


# ----------------------------------- Pallas kernel -----------------------------------

def _make_kernel(*, if_relu, M, H, two_n, Hr, two_nL, M_out, n_chunks):
    c_pow = float(two_n * 0.5) ** 0.5            # sqrt(2n) * sqrt(0.5)

    def act(v):
        return jnp.maximum(v, 0.0) if if_relu else jnp.tanh(v)

    def kernel(x_ref, noise_ref, w_ref, b_ref, out_ref):
        def matmul(wk, a, dout, din):
            # weights in PyTorch (out, in) layout; batch is the lane-dense N dim.
            w = w_ref[wk, :dout, :din]
            return jnp.dot(w, a, preferred_element_type=jnp.float32)

        def lin(wk, bk, a, dout, din):
            # bias slab is pre-broadcast to the 128-lane chunk width: lane-for-lane add.
            return matmul(wk, a, dout, din) + b_ref[bk, :dout, :]

        def run_chunk(col):
            xs = x_ref[:, pl.ds(col, _CH)]
            ns = noise_ref[:, pl.ds(col, _CH)]

            # ---- encoder --------------------------------------------------------
            x1 = act(lin(_W1, _B1, xs, H, M))
            # [W2 ; Hm^T W2] fused: rows [:two_n] feed the power norm, rows [two_n:]
            # are the (pre-scale) channel output -- the normalization scale commutes
            # with the linear channel matrix Hm.
            y2 = lin(_W2CAT, _B2CAT, x1, 2 * two_n, H)
            x2 = y2[:two_n, :]
            xc = y2[two_n:, :]

            # average-power normalization as a per-column scale (EUP rsqrt).
            # NOTE: like the PyTorch reference, no epsilon -- an all-zero column -> inf/nan.
            sumsq = jnp.sum(x2 * x2, axis=0, keepdims=True)
            scale = c_pow * lax.rsqrt(sumsq)
            xch = scale * xc + ns                           # channel output + AWGN

            # ---- RTN: estimate inverse taps (Wr3 folded into broadcast matrices) --
            t = jnp.tanh(lin(_WR1, _BR1, xch, Hr, two_n))
            t = jnp.tanh(lin(_WR2, _BR2, t, Hr, Hr))
            ha = lin(_WACAT, _BACAT, t, 2 * two_nL, Hr)     # [hr ; hi], tap-broadcast
            hr = ha[:two_nL, :]
            hi = ha[two_nL:, :]

            # ---- complex transposed conv with per-column taps ----------------------
            # [tiled x ; pair-swapped tiled x] in one dot; depends only on xch so it
            # overlaps the RTN chain on the MXU.
            xts = matmul(_TXCAT, xch, 2 * two_nL, two_n)
            p = xts[:two_nL, :] * hr + xts[two_nL:, :] * hi

            # ---- decoder (scatter-add matrix S folded into W3) ---------------------
            x3 = act(lin(_SW3, _B3, p, H, two_nL))
            out_ref[:, pl.ds(col, _CH)] = lin(_W4, _B4, x3, M_out, H)

        if n_chunks == 1:
            run_chunk(0)
        else:
            # rolled loop bounds vreg live ranges to a single 128-lane chunk.
            def body(c, carry):
                run_chunk(pl.multiple_of(c * _CH, _CH))
                return carry
            lax.fori_loop(0, n_chunks, body, 0)

    return kernel


# ------------------------------------- builder ---------------------------------------

def make_meta_net_dnn_forward(var, h, *, if_relu=True):
    """Build a jitted Pallas forward of meta_Net_DNN for if_bias=True, if_RTN=True.

    var = [w1,b1, w2,b2, w_rtn_1,b_rtn_1, w_rtn_2,b_rtn_2, w_rtn_3,b_rtn_3, w3,b3, w4,b4]
    in PyTorch F.linear layout (weight (out,in), bias (out,)).  All constant-matrix
    construction and algebraic folding happens ONCE here; the returned callable is
    forward(x, noise) with x (B, M), noise (B, 2n).
    """
    # TODO(synk): if_bias=False / if_RTN=False layer schedules are not built here.
    v = [np.asarray(a, np.float32) for a in var]
    (w1, b1, w2, b2, wr1, br1, wr2, br2, wr3, br3, w3, b3, w4, b4) = v
    h = np.asarray(h, np.float32)

    M, H = w1.shape[1], w1.shape[0]
    two_n = w2.shape[0]
    n = two_n // 2
    Hr = wr1.shape[0]
    L = wr3.shape[0] // 2
    two_nL = two_n * L
    M_out = w4.shape[0]

    Hm = _channel_matrix(h, n)
    Psw, Tx, Ar, Ai, S = _deconv_matrices(n, L)

    # ---- host-side constant folds, kept in PyTorch (out, in) orientation ----
    weights = [
        w1,                                                 # _W1     (H, M)
        np.concatenate([w2, Hm.T @ w2], axis=0),            # _W2CAT  (2*two_n, H)
        wr1,                                                # _WR1    (Hr, two_n)
        wr2,                                                # _WR2    (Hr, Hr)
        np.concatenate([Ar.T @ wr3, Ai.T @ wr3], axis=0),   # _WACAT  (2*two_nL, Hr)
        np.concatenate([Tx.T, (Psw @ Tx).T], axis=0),       # _TXCAT  (2*two_nL, two_n)
        w3 @ S.T,                                           # _SW3    (H, two_nL)
        w4,                                                 # _W4     (M_out, H)
    ]
    biases = [
        b1,                                                 # _B1
        np.concatenate([b2, Hm.T @ b2]),                    # _B2CAT
        br1,                                                # _BR1
        br2,                                                # _BR2
        np.concatenate([Ar.T @ br3, Ai.T @ br3]),           # _BACAT
        b3,                                                 # _B3
        b4,                                                 # _B4
    ]
    dims_io = [w.shape for w in weights]                    # (dout, din) per dot

    row_pad = _round_up(max(w.shape[0] for w in weights), 8)
    col_pad = _round_up(max(w.shape[1] for w in weights), 128)

    # Weights stay f32: contractions are <=48 deep and the kernel is latency-bound,
    # so bf16 MXU throughput would not show up but would eat the accuracy budget.
    w_np = np.zeros((len(weights), row_pad, col_pad), np.float32)
    for k, w in enumerate(weights):
        w_np[k, :w.shape[0], :w.shape[1]] = w
    # biases pre-broadcast across the 128-lane chunk width -> plain elementwise add.
    b_np = np.zeros((len(biases), row_pad, _CH), np.float32)
    for k, b in enumerate(biases):
        b_np[k, :b.shape[0], :] = b[:, None]
    w_slab = jnp.asarray(w_np)
    b_slab = jnp.asarray(b_np)
    slab_bytes = int(w_np.nbytes + b_np.nbytes)

    @jax.jit
    def forward(x, noise):
        x = jnp.asarray(x, jnp.float32)
        noise = jnp.asarray(noise, jnp.float32)
        B = x.shape[0]
        B_pad = max(_CH, _round_up(B, _CH))

        # batch block: largest of {512,256,128} lanes dividing B_pad while keeping
        # >=2 grid steps (v7x megacore sharding); single block only when B_pad == 128.
        bb = _CH
        for cand in (512, 256, 128):
            if B_pad % cand == 0 and B_pad // cand >= 2:
                bb = cand
                break
        n_chunks = bb // _CH
        grid = (B_pad // bb,)

        # feature-major, lane-dense layout: (features, batch); zero-pad batch lanes.
        # Padded lanes never contaminate valid lanes (batch is never a contraction axis).
        xT = jnp.zeros((M, B_pad), jnp.float32).at[:, :B].set(x.T)
        nT = jnp.zeros((two_n, B_pad), jnp.float32).at[:, :B].set(noise.T)

        kernel = _make_kernel(if_relu=if_relu, M=M, H=H, two_n=two_n, Hr=Hr,
                              two_nL=two_nL, M_out=M_out, n_chunks=n_chunks)

        flops = 2 * B_pad * sum(dout * din for dout, din in dims_io)
        transc = B_pad * (2 * Hr + 1 + (0 if if_relu else 2 * H))
        bytes_acc = 4 * B_pad * (M + two_n + M_out) + slab_bytes

        block_bytes = 4 * bb * (M + two_n + M_out)
        vmem_limit = 2 * block_bytes + slab_bytes + 4 * 1024 * 1024   # io dbl-buf + slabs + headroom

        outT = pl.pallas_call(
            kernel,
            out_shape=jax.ShapeDtypeStruct((M_out, B_pad), jnp.float32),
            grid=grid,
            in_specs=[
                pl.BlockSpec((M, bb), lambda i: (0, i)),
                pl.BlockSpec((two_n, bb), lambda i: (0, i)),
                pl.BlockSpec(w_slab.shape, lambda i: (0, 0, 0)),   # VMEM-resident
                pl.BlockSpec(b_slab.shape, lambda i: (0, 0, 0)),   # VMEM-resident
            ],
            out_specs=pl.BlockSpec((M_out, bb), lambda i: (0, i)),
            compiler_params=pltpu.CompilerParams(
                dimension_semantics=("parallel",),
                vmem_limit_bytes=int(vmem_limit),
            ),
            cost_estimate=pl.CostEstimate(
                flops=flops, transcendentals=transc, bytes_accessed=bytes_acc),
        )(xT, nT, w_slab, b_slab)

        return outT[:, :B].T

    return forward


# --------------------------- pure numpy reference (checking) --------------------------

def _reference_forward(x, var, h, noise, if_relu=True):
    v = [np.asarray(a, np.float32) for a in var]
    (w1, b1, w2, b2, wr1, br1, wr2, br2, wr3, br3, w3, b3, w4, b4) = v
    x = np.asarray(x, np.float32)
    h = np.asarray(h, np.float32)
    noise = np.asarray(noise, np.float32)
    act = (lambda a: np.maximum(a, 0.0)) if if_relu else np.tanh
    lin = lambda a, w, b: a @ w.T + b

    x = lin(x, w1, b1)
    x = act(x)
    x = lin(x, w2, b2)
    norm = np.linalg.norm(x, axis=1, keepdims=True)
    x = (x.shape[1] ** 0.5) * (0.5 ** 0.5) * x / norm
    # complex_mul_taps(h, x)
    L = h.shape[0] // 2
    n = x.shape[1] // 2
    y = np.zeros_like(x)
    for i in range(n):
        for j in range(min(L, i + 1)):
            y[:, 2 * i] += h[2 * j] * x[:, 2 * (i - j)] - h[2 * j + 1] * x[:, 2 * (i - j) + 1]
            y[:, 2 * i + 1] += h[2 * j] * x[:, 2 * (i - j) + 1] + h[2 * j + 1] * x[:, 2 * (i - j)]
    x = y + noise
    # RTN
    t = np.tanh(lin(x, wr1, br1))
    t = np.tanh(lin(t, wr2, br2))
    hinv = lin(t, wr3, br3)
    # complex_conv_transpose(hinv, x)
    Lr = hinv.shape[1] // 2
    d = np.zeros((x.shape[0], 2 * (n + Lr - 1)), np.float32)
    for i in range(n):
        for j in range(Lr):
            d[:, 2 * (i + j)] += x[:, 2 * i] * hinv[:, 2 * j] - x[:, 2 * i + 1] * hinv[:, 2 * j + 1]
            d[:, 2 * (i + j) + 1] += x[:, 2 * i] * hinv[:, 2 * j + 1] + x[:, 2 * i + 1] * hinv[:, 2 * j]
    x = d
    x = lin(x, w3, b3)
    x = act(x)
    x = lin(x, w4, b4)
    return x


# -------------------------------------- main -----------------------------------------

if __name__ == "__main__":
    B, M, H, n, L, Hr = 8, 16, 32, 4, 3, 32      # batch, messages, hidden, channel uses, taps
    two_n, dec_in = 2 * n, 2 * (n + L - 1)
    if_relu = True

    key = jax.random.PRNGKey(0)
    ks = jax.random.split(key, 20)
    g = lambda k, shp, s=0.3: (s * jax.random.normal(k, shp, jnp.float32))

    var = [
        g(ks[0], (H, M)),       g(ks[1], (H,)),        # w1, b1
        g(ks[2], (two_n, H)),   g(ks[3], (two_n,)),    # w2, b2
        g(ks[4], (Hr, two_n)),  g(ks[5], (Hr,)),       # w_rtn_1, b_rtn_1
        g(ks[6], (Hr, Hr)),     g(ks[7], (Hr,)),       # w_rtn_2, b_rtn_2
        g(ks[8], (2 * L, Hr)),  g(ks[9], (2 * L,)),    # w_rtn_3, b_rtn_3
        g(ks[10], (H, dec_in)), g(ks[11], (H,)),       # w3, b3
        g(ks[12], (M, H)),      g(ks[13], (M,)),       # w4, b4
    ]
    x = jax.random.normal(ks[14], (B, M), jnp.float32)
    h_taps = 0.5 * jax.random.normal(ks[15], (2 * L,), jnp.float32)    # fixed channel taps
    noise = 0.1 * jax.random.normal(ks[16], (B, two_n), jnp.float32)   # stands in for noise_dist.sample()

    forward = make_meta_net_dnn_forward(var, h_taps, if_relu=if_relu)  # host prep hoisted, jitted

    # small-batch check (B=8 -> padded to one 128-lane block, single grid step).
    out = jax.block_until_ready(forward(x, noise))
    ref = _reference_forward(np.asarray(x), var, np.asarray(h_taps), np.asarray(noise), if_relu)
    np.testing.assert_allclose(np.asarray(out), ref, rtol=2e-3, atol=2e-3)

    # second check exercises batch padding, a multi-step grid and the in-kernel
    # multi-chunk path (B=509 -> B_pad=512, bb=256, grid=(2,), 2 chunks per block).
    B2 = 509
    x2 = jax.random.normal(ks[17], (B2, M), jnp.float32)
    noise2 = 0.1 * jax.random.normal(ks[18], (B2, two_n), jnp.float32)
    out2 = jax.block_until_ready(forward(x2, noise2))
    ref2 = _reference_forward(np.asarray(x2), var, np.asarray(h_taps), np.asarray(noise2), if_relu)
    np.testing.assert_allclose(np.asarray(out2), ref2, rtol=2e-3, atol=2e-3)

    print("KERNEL_OK")
</pallas_src>

<mosaic_0001>
module attributes {stable_mosaic.version = 11 : i64} {
  func.func @kernel(%arg0: i32, %arg1: memref<16x128xf32, #tpu.memory_space<vmem>>, %arg2: memref<8x128xf32, #tpu.memory_space<vmem>>, %arg3: memref<8x48x128xf32, #tpu.memory_space<vmem>>, %arg4: memref<7x48x128xf32, #tpu.memory_space<vmem>>, %arg5: memref<16x128xf32, #tpu.memory_space<vmem>>) attributes {dimension_semantics = [#tpu.dimension_semantics<parallel>], iteration_bounds = array<i64: 1>, scalar_prefetch = 0 : i64, scratch_operands = 0 : i64, tpu.core_type = #tpu.core_type<tc>, window_params = [{transform_indices = @transform_0, window_bounds = array<i64: 16, 128>}, {transform_indices = @transform_1, window_bounds = array<i64: 8, 128>}, {pipeline_mode = #tpu.pipeline_mode<synchronous>, transform_indices = @transform_2, window_bounds = array<i64: 8, 48, 128>}, {pipeline_mode = #tpu.pipeline_mode<synchronous>, transform_indices = @transform_3, window_bounds = array<i64: 7, 48, 128>}, {transform_indices = @transform_4, window_bounds = array<i64: 16, 128>}]} {
    %c0 = arith.constant 0 : index
    %c0_0 = arith.constant 0 : index
    %0 = vector.load %arg1[%c0, %c0_0] : memref<16x128xf32, #tpu.memory_space<vmem>>, vector<16x128xf32>
    %c0_1 = arith.constant 0 : index
    %c0_2 = arith.constant 0 : index
    %1 = vector.load %arg2[%c0_1, %c0_2] : memref<8x128xf32, #tpu.memory_space<vmem>>, vector<8x128xf32>
    %c0_3 = arith.constant 0 : index
    %c0_4 = arith.constant 0 : index
    %c0_5 = arith.constant 0 : index
    %2 = vector.load %arg3[%c0_3, %c0_4, %c0_5] : memref<8x48x128xf32, #tpu.memory_space<vmem>>, vector<1x32x16xf32>
    %3 = vector.shape_cast %2 : vector<1x32x16xf32> to vector<32x16xf32>
    %cst = arith.constant dense<0.000000e+00> : vector<32x128xf32>
    %4 = tpu.matmul %3, %0, %cst {dimension_numbers = #tpu.dot_dimension_numbers<[1], [0], [0], [1], [0, 0, 1, 1], [], []>} : vector<32x16xf32>, vector<16x128xf32>, vector<32x128xf32> -> vector<32x128xf32>
    %c0_6 = arith.constant 0 : index
    %c0_7 = arith.constant 0 : index
    %c0_8 = arith.constant 0 : index
    %5 = vector.load %arg4[%c0_6, %c0_7, %c0_8] : memref<7x48x128xf32, #tpu.memory_space<vmem>>, vector<1x32x128xf32>
    %6 = vector.shape_cast %5 : vector<1x32x128xf32> to vector<32x128xf32>
    %7 = arith.addf %4, %6 : vector<32x128xf32>
    %cst_9 = arith.constant 0.000000e+00 : f32
    %8 = vector.broadcast %cst_9 : f32 to vector<32x128xf32>
    %9 = arith.maximumf %7, %8 : vector<32x128xf32>
    %c1 = arith.constant 1 : index
    %c0_10 = arith.constant 0 : index
    %c0_11 = arith.constant 0 : index
    %10 = vector.load %arg3[%c1, %c0_10, %c0_11] : memref<8x48x128xf32, #tpu.memory_space<vmem>>, vector<1x16x32xf32>
    %11 = vector.shape_cast %10 : vector<1x16x32xf32> to vector<16x32xf32>
    %cst_12 = arith.constant dense<0.000000e+00> : vector<16x128xf32>
    %12 = tpu.matmul %11, %9, %cst_12 {dimension_numbers = #tpu.dot_dimension_numbers<[1], [0], [0], [1], [0, 0, 1, 1], [], []>} : vector<16x32xf32>, vector<32x128xf32>, vector<16x128xf32> -> vector<16x128xf32>
    %c1_13 = arith.constant 1 : index
    %c0_14 = arith.constant 0 : index
    %c0_15 = arith.constant 0 : index
    %13 = vector.load %arg4[%c1_13, %c0_14, %c0_15] : memref<7x48x128xf32, #tpu.memory_space<vmem>>, vector<1x16x128xf32>
    %14 = vector.shape_cast %13 : vector<1x16x128xf32> to vector<16x128xf32>
    %15 = arith.addf %12, %14 : vector<16x128xf32>
    %16 = vector.extract_strided_slice %15 {offsets = [0, 0], sizes = [8, 128], strides = [1, 1]} : vector<16x128xf32> to vector<8x128xf32>
    %17 = vector.extract_strided_slice %15 {offsets = [8, 0], sizes = [8, 128], strides = [1, 1]} : vector<16x128xf32> to vector<8x128xf32>
    %18 = arith.mulf %16, %16 : vector<8x128xf32>
    %cst_16 = arith.constant dense<0.000000e+00> : vector<128xf32>
    %19 = vector.multi_reduction <add>, %18, %cst_16 [0] : vector<8x128xf32> to vector<128xf32>
    %20 = vector.shape_cast %19 : vector<128xf32> to vector<1x128xf32>
    %21 = math.rsqrt %20 : vector<1x128xf32>
    %cst_17 = arith.constant 2.000000e+00 : f32
    %22 = vector.broadcast %cst_17 : f32 to vector<1x128xf32>
    %23 = arith.mulf %22, %21 : vector<1x128xf32>
    %24 = vector.broadcast %23 : vector<1x128xf32> to vector<8x128xf32>
    %25 = arith.mulf %24, %17 : vector<8x128xf32>
    %26 = arith.addf %25, %1 : vector<8x128xf32>
    %c2 = arith.constant 2 : index
    %c0_18 = arith.constant 0 : index
    %c0_19 = arith.constant 0 : index
    %27 = vector.load %arg3[%c2, %c0_18, %c0_19] : memref<8x48x128xf32, #tpu.memory_space<vmem>>, vector<1x32x8xf32>
    %28 = vector.shape_cast %27 : vector<1x32x8xf32> to vector<32x8xf32>
    %cst_20 = arith.constant dense<0.000000e+00> : vector<32x128xf32>
    %29 = tpu.matmul %28, %26, %cst_20 {dimension_numbers = #tpu.dot_dimension_numbers<[1], [0], [0], [1], [0, 0, 1, 1], [], []>} : vector<32x8xf32>, vector<8x128xf32>, vector<32x128xf32> -> vector<32x128xf32>
    %c2_21 = arith.constant 2 : index
    %c0_22 = arith.constant 0 : index
    %c0_23 = arith.constant 0 : index
    %30 = vector.load %arg4[%c2_21, %c0_22, %c0_23] : memref<7x48x128xf32, #tpu.memory_space<vmem>>, vector<1x32x128xf32>
    %31 = vector.shape_cast %30 : vector<1x32x128xf32> to vector<32x128xf32>
    %32 = arith.addf %29, %31 : vector<32x128xf32>
    %33 = math.tanh %32 : vector<32x128xf32>
    %c3 = arith.constant 3 : index
    %c0_24 = arith.constant 0 : index
    %c0_25 = arith.constant 0 : index
    %34 = vector.load %arg3[%c3, %c0_24, %c0_25] : memref<8x48x128xf32, #tpu.memory_space<vmem>>, vector<1x32x32xf32>
    %35 = vector.shape_cast %34 : vector<1x32x32xf32> to vector<32x32xf32>
    %cst_26 = arith.constant dense<0.000000e+00> : vector<32x128xf32>
    %36 = tpu.matmul %35, %33, %cst_26 {dimension_numbers = #tpu.dot_dimension_numbers<[1], [0], [0], [1], [0, 0, 1, 1], [], []>} : vector<32x32xf32>, vector<32x128xf32>, vector<32x128xf32> -> vector<32x128xf32>
    %c3_27 = arith.constant 3 : index
    %c0_28 = arith.constant 0 : index
    %c0_29 = arith.constant 0 : index
    %37 = vector.load %arg4[%c3_27, %c0_28, %c0_29] : memref<7x48x128xf32, #tpu.memory_space<vmem>>, vector<1x32x128xf32>
    %38 = vector.shape_cast %37 : vector<1x32x128xf32> to vector<32x128xf32>
    %39 = arith.addf %36, %38 : vector<32x128xf32>
    %40 = math.tanh %39 : vector<32x128xf32>
    %c4 = arith.constant 4 : index
    %c0_30 = arith.constant 0 : index
    %c0_31 = arith.constant 0 : index
    %41 = vector.load %arg3[%c4, %c0_30, %c0_31] : memref<8x48x128xf32, #tpu.memory_space<vmem>>, vector<1x48x32xf32>
    %42 = vector.shape_cast %41 : vector<1x48x32xf32> to vector<48x32xf32>
    %cst_32 = arith.constant dense<0.000000e+00> : vector<48x128xf32>
    %43 = tpu.matmul %42, %40, %cst_32 {dimension_numbers = #tpu.dot_dimension_numbers<[1], [0], [0], [1], [0, 0, 1, 1], [], []>} : vector<48x32xf32>, vector<32x128xf32>, vector<48x128xf32> -> vector<48x128xf32>
    %c4_33 = arith.constant 4 : index
    %c0_34 = arith.constant 0 : index
    %c0_35 = arith.constant 0 : index
    %44 = vector.load %arg4[%c4_33, %c0_34, %c0_35] : memref<7x48x128xf32, #tpu.memory_space<vmem>>, vector<1x48x128xf32>
    %45 = vector.shape_cast %44 : vector<1x48x128xf32> to vector<48x128xf32>
    %46 = arith.addf %43, %45 : vector<48x128xf32>
    %47 = vector.extract_strided_slice %46 {offsets = [0, 0], sizes = [24, 128], strides = [1, 1]} : vector<48x128xf32> to vector<24x128xf32>
    %48 = vector.extract_strided_slice %46 {offsets = [24, 0], sizes = [24, 128], strides = [1, 1]} : vector<48x128xf32> to vector<24x128xf32>
    %c5 = arith.constant 5 : index
    %c0_36 = arith.constant 0 : index
    %c0_37 = arith.constant 0 : index
    %49 = vector.load %arg3[%c5, %c0_36, %c0_37] : memref<8x48x128xf32, #tpu.memory_space<vmem>>, vector<1x48x8xf32>
    %50 = vector.shape_cast %49 : vector<1x48x8xf32> to vector<48x8xf32>
    %cst_38 = arith.constant dense<0.000000e+00> : vector<48x128xf32>
    %51 = tpu.matmul %50, %26, %cst_38 {dimension_numbers = #tpu.dot_dimension_numbers<[1], [0], [0], [1], [0, 0, 1, 1], [], []>} : vector<48x8xf32>, vector<8x128xf32>, vector<48x128xf32> -> vector<48x128xf32>
    %52 = vector.extract_strided_slice %51 {offsets = [0, 0], sizes = [24, 128], strides = [1, 1]} : vector<48x128xf32> to vector<24x128xf32>
    %53 = arith.mulf %52, %47 : vector<24x128xf32>
    %54 = vector.extract_strided_slice %51 {offsets = [24, 0], sizes = [24, 128], strides = [1, 1]} : vector<48x128xf32> to vector<24x128xf32>
    %55 = arith.mulf %54, %48 : vector<24x128xf32>
    %56 = arith.addf %53, %55 : vector<24x128xf32>
    %c6 = arith.constant 6 : index
    %c0_39 = arith.constant 0 : index
    %c0_40 = arith.constant 0 : index
    %57 = vector.load %arg3[%c6, %c0_39, %c0_40] : memref<8x48x128xf32, #tpu.memory_space<vmem>>, vector<1x32x24xf32>
    %58 = vector.shape_cast %57 : vector<1x32x24xf32> to vector<32x24xf32>
    %cst_41 = arith.constant dense<0.000000e+00> : vector<32x128xf32>
    %59 = tpu.matmul %58, %56, %cst_41 {dimension_numbers = #tpu.dot_dimension_numbers<[1], [0], [0], [1], [0, 0, 1, 1], [], []>} : vector<32x24xf32>, vector<24x128xf32>, vector<32x128xf32> -> vector<32x128xf32>
    %c5_42 = arith.constant 5 : index
    %c0_43 = arith.constant 0 : index
    %c0_44 = arith.constant 0 : index
    %60 = vector.load %arg4[%c5_42, %c0_43, %c0_44] : memref<7x48x128xf32, #tpu.memory_space<vmem>>, vector<1x32x128xf32>
    %61 = vector.shape_cast %60 : vector<1x32x128xf32> to vector<32x128xf32>
    %62 = arith.addf %59, %61 : vector<32x128xf32>
    %cst_45 = arith.constant 0.000000e+00 : f32
    %63 = vector.broadcast %cst_45 : f32 to vector<32x128xf32>
    %64 = arith.maximumf %62, %63 : vector<32x128xf32>
    %c7 = arith.constant 7 : index
    %c0_46 = arith.constant 0 : index
    %c0_47 = arith.constant 0 : index
    %65 = vector.load %arg3[%c7, %c0_46, %c0_47] : memref<8x48x128xf32, #tpu.memory_space<vmem>>, vector<1x16x32xf32>
    %66 = vector.shape_cast %65 : vector<1x16x32xf32> to vector<16x32xf32>
    %cst_48 = arith.constant dense<0.000000e+00> : vector<16x128xf32>
    %67 = tpu.matmul %66, %64, %cst_48 {dimension_numbers = #tpu.dot_dimension_numbers<[1], [0], [0], [1], [0, 0, 1, 1], [], []>} : vector<16x32xf32>, vector<32x128xf32>, vector<16x128xf32> -> vector<16x128xf32>
    %c6_49 = arith.constant 6 : index
    %c0_50 = arith.constant 0 : index
    %c0_51 = arith.constant 0 : index
    %68 = vector.load %arg4[%c6_49, %c0_50, %c0_51] : memref<7x48x128xf32, #tpu.memory_space<vmem>>, vector<1x16x128xf32>
    %69 = vector.shape_cast %68 : vector<1x16x128xf32> to vector<16x128xf32>
    %70 = arith.addf %67, %69 : vector<16x128xf32>
    %c0_52 = arith.constant 0 : index
    %c0_53 = arith.constant 0 : index
    %71 = vector.load %arg5[%c0_52, %c0_53] : memref<16x128xf32, #tpu.memory_space<vmem>>, vector<16x128xf32>
    tpu.vector_store %arg5[%c0_52, %c0_53], %70 {strides = array<i32>} : memref<16x128xf32, #tpu.memory_space<vmem>>, vector<16x128xf32>,
    return
  }
  func.func @transform_0(%arg0: i32) -> (i32, i32) {
    %c0_i32 = arith.constant 0 : i32
    %c0_i32_0 = arith.constant 0 : i32
    return %c0_i32, %arg0 : i32, i32
  }
  func.func @transform_1(%arg0: i32) -> (i32, i32) {
    %c0_i32 = arith.constant 0 : i32
    %c0_i32_0 = arith.constant 0 : i32
    return %c0_i32, %arg0 : i32, i32
  }
  func.func @transform_2(%arg0: i32) -> (i32, i32, i32) {
    %c0_i32 = arith.constant 0 : i32
    %c0_i32_0 = arith.constant 0 : i32
    %c0_i32_1 = arith.constant 0 : i32
    %c0_i32_2 = arith.constant 0 : i32
    return %c0_i32, %c0_i32_0, %c0_i32_1 : i32, i32, i32
  }
  func.func @transform_3(%arg0: i32) -> (i32, i32, i32) {
    %c0_i32 = arith.constant 0 : i32
    %c0_i32_0 = arith.constant 0 : i32
    %c0_i32_1 = arith.constant 0 : i32
    %c0_i32_2 = arith.constant 0 : i32
    return %c0_i32, %c0_i32_0, %c0_i32_1 : i32, i32, i32
  }
  func.func @transform_4(%arg0: i32) -> (i32, i32) {
    %c0_i32 = arith.constant 0 : i32
    %c0_i32_0 = arith.constant 0 : i32
    return %c0_i32, %arg0 : i32, i32
  }
}

</mosaic_0001>

<llo_original>
// kernel: forward.1
$region0: #{forward.1}
  #allocation0 [shape = 'u32[]', space=smem, size = 0x4, offset = 0x4, fixed_abs, tag = 'smem constant byte address 0x4 - core index']
  #allocation1 [shape = 'u32[144,128]{1,0:T(1,128)}', space=vmem, size = 0x12000, scoped, tag = 'internal scratch']
  %s0 = inlined_call_operand.vmem [shape: f32[16,128], index: 0, kind: input, shape index: {}]
  %s1 = inlined_call_operand.vmem [shape: f32[8,128], index: 1, kind: input, shape index: {}]
  %s2 = inlined_call_operand.hbm [shape: f32[8,48,128], index: 2, kind: input, shape index: {}]
  %s3 = inlined_call_operand.hbm [shape: f32[7,48,128], index: 3, kind: input, shape index: {}]
  %s4 = inlined_call_operand.vmem [shape: f32[16,128], index: 4, kind: output, shape index: {}]
  %s5 = sld [smem:[#allocation0]]
  $region34: #{forward.1} parent=0
    _
  %s7 = ssub.s32 1, %s5
  %s8 = scalar_select 0, %s7, %s5
  $region1: #{forward.1} parent=0
    #allocation2 [shape = 'u8[196608]{0}', space=vmem, size = 0x30000, scoped, tag = 'input window, operand 2, single buffered']
    #allocation3 [shape = 's32[1]{0}', space=sflag, size = 0x4, scoped, tag = 'scoped memory for forward.1']
    #allocation4 [shape = 'u8[172032]{0}', space=vmem, size = 0x2a000, scoped, tag = 'input window, operand 3, single buffered']
    #allocation5 [shape = 's32[1]{0}', space=sflag, size = 0x4, scoped, tag = 'scoped memory for forward.1']
    %9 = vsyncpa [#allocation3], 0
    %10 = vsyncpa [#allocation5], 0
    // Predicated region
    $region2: #{forward.1} parent=1 // pred_check
      _
    $region3: #{forward.1} parent=1 // pred_check_branch
      %12 = sbr.rel (0) target = $region5
    $region4: #{forward.1} parent=1 // pred_region
      _
    $region5: #{forward.1} parent=1 // pred_fallthru
      _
    // Predicated region
    $region6: #{forward.1} parent=1 // pred_check
      _
    $region7: #{forward.1} parent=1 // pred_check_branch
      %14 = sbr.rel (0) target = $region9
    $region8: #{forward.1} parent=1 // pred_region
      _
    $region9: #{forward.1} parent=1 // pred_fallthru
      _
    // Predicated region
    $region10: #{forward.1} parent=1 // pred_check
      _
    $region11: #{forward.1} parent=1 // pred_check_branch
      %16 = sbr.rel (0) target = $region13
    $region12: #{forward.1} parent=1 // pred_region
      %s18 = ssub.s32 6144, 6144
      %19 = vsyncadd [#allocation3], %s18
      %s20 = sshll.u32 [#allocation2], 4
      %s21 = int_to_ptr.vmem [resolvable:$true] %s20
      %26 = dma.hbm_to_vmem [thread:$0]  %s2, 6144, %s21, [#allocation3], 128, 128, 8
    $region13: #{forward.1} parent=1 // pred_fallthru
      _
    // Predicated region
    $region14: #{forward.1} parent=1 // pred_check
      _
    $region15: #{forward.1} parent=1 // pred_check_branch
      %28 = sbr.rel (0) target = $region17
    $region16: #{forward.1} parent=1 // pred_region
      %s30 = ssub.s32 5376, 5376
      %31 = vsyncadd [#allocation5], %s30
      %s32 = sshll.u32 [#allocation4], 4
      %s33 = int_to_ptr.vmem [resolvable:$true] %s32
      %38 = dma.hbm_to_vmem [thread:$0]  %s3, 5376, %s33, [#allocation5], 128, 128, 8
    $region17: #{forward.1} parent=1 // pred_fallthru
      _
    // Predicated region
    $region18: #{forward.1} parent=1 // pred_check
      _
    $region19: #{forward.1} parent=1 // pred_check_branch
      %40 = sbr.rel (0) target = $region21
    $region20: #{forward.1} parent=1 // pred_region
      %41 = dma.done [#allocation3], 6144
    $region21: #{forward.1} parent=1 // pred_fallthru
      _
    // Predicated region
    $region22: #{forward.1} parent=1 // pred_check
      _
    $region23: #{forward.1} parent=1 // pred_check_branch
      %43 = sbr.rel (0) target = $region25
    $region24: #{forward.1} parent=1 // pred_region
      %44 = dma.done [#allocation5], 5376
    $region25: #{forward.1} parent=1 // pred_fallthru
      _
    %v45 = vld [vmem:[%s0] sm:$0xff]
    %v46 = vld [vmem:[%s0 + $0x8] sm:$0xff]
    %v47 = vld [vmem:[%s1] sm:$0xff]
    %v48 = vld [vmem:[#allocation2] sm:$0xff]
    %v49 = vld [vmem:[#allocation2 + $0x8] sm:$0xff]
    %v50 = vld [vmem:[#allocation2 + $0x10] sm:$0xff]
    %v51 = vld [vmem:[#allocation2 + $0x18] sm:$0xff]
    %v52 = vld [vmem:[#allocation4] sm:$0xff]
    %v53 = vld [vmem:[#allocation4 + $0x8] sm:$0xff]
    %v54 = vld [vmem:[#allocation4 + $0x10] sm:$0xff]
    %v55 = vld [vmem:[#allocation4 + $0x18] sm:$0xff]
    %vm56 = vcmask 130048
    %v58 = vsel %vm56, %v48, 0
    %v61 = vsel %vm56, %v49, 0
    %v64 = vsel %vm56, %v50, 0
    %v67 = vsel %vm56, %v51, 0
    %69 = vmatprep.subr.mxu0 0.0
    %70 = vmatpush1.msra.mxu0 0.0
    %71 = vmatprep.subr.mxu0 0.0
    %72 = vmatpush1.msra.mxu0 0.0
    %73 = vmatprep.subr.mxu0 0.0
    %74 = vmatpush1.msra.mxu0 0.0
    %75 = vmatprep.subr.mxu0 0.0
    %76 = vmatpush1.msra.mxu0 0.0
    %77 = vmatprep.subr.mxu0 0.0
    %78 = vmatpush1.msra.mxu0 0.0
    %79 = vmatprep.subr.mxu0 0.0
    %80 = vmatpush1.msra.mxu0 0.0
    %81 = vmatprep.subr.mxu0 0.0
    %82 = vmatpush1.msra.mxu0 0.0
    %83 = vmatprep.subr.mxu0 0.0
    %84 = vmatpush1.msra.mxu0 0.0
    %85 = vmatprep.subr.mxu0 0.0
    %86 = vmatpush1.msra.mxu0 0.0
    %87 = vmatprep.subr.mxu0 0.0
    %88 = vmatpush1.msra.mxu0 0.0
    %89 = vmatprep.subr.mxu0 0.0
    %90 = vmatpush1.msra.mxu0 0.0
    %91 = vmatprep.subr.mxu0 0.0
    %92 = vmatpush1.msra.mxu0 0.0
    %93 = vmatprep.subr.mxu0 0.0
    %94 = vmatpush1.msra.mxu0 0.0
    %95 = vmatprep.subr.mxu0 0.0
    %96 = vmatpush1.msra.mxu0 0.0
    %97 = vmatprep.subr.mxu0 0.0
    %98 = vmatpush1.msra.mxu0 %v46
    %99 = vmatprep.subr.mxu0 0.0
    %100 = vmatpush1.msra.mxu0 %v45
    %101 = vmatprep.subr.mxu0 0.0
    %102 = vmatpush2.msra.mxu0 0.0
    %103 = vmatprep.subr.mxu0 0.0
    %104 = vmatpush2.msra.mxu0 0.0
    %105 = vmatprep.subr.mxu0 0.0
    %106 = vmatpush2.msra.mxu0 0.0
    %107 = vmatprep.subr.mxu0 0.0
    %108 = vmatpush2.msra.mxu0 0.0
    %109 = vmatprep.subr.mxu0 0.0
    %110 = vmatpush2.msra.mxu0 0.0
    %111 = vmatprep.subr.mxu0 0.0
    %112 = vmatpush2.msra.mxu0 0.0
    %113 = vmatprep.subr.mxu0 0.0
    %114 = vmatpush2.msra.mxu0 0.0
    %115 = vmatprep.subr.mxu0 0.0
    %116 = vmatpush2.msra.mxu0 0.0
    %117 = vmatprep.subr.mxu0 0.0
    %118 = vmatpush2.msra.mxu0 0.0
    %119 = vmatprep.subr.mxu0 0.0
    %120 = vmatpush2.msra.mxu0 0.0
    %121 = vmatprep.subr.mxu0 0.0
    %122 = vmatpush2.msra.mxu0 0.0
    %123 = vmatprep.subr.mxu0 0.0
    %124 = vmatpush2.msra.mxu0 0.0
    %125 = vmatprep.subr.mxu0 0.0
    %126 = vmatpush2.msra.mxu0 0.0
    %127 = vmatprep.subr.mxu0 0.0
    %128 = vmatpush2.msra.mxu0 0.0
    %129 = vmatprep.subr.mxu0 0.0
    %130 = vmatpush2.msra.mxu0 0.0
    %131 = vmatprep.subr.mxu0 0.0
    %132 = vmatpush2.msra.mxu0 0.0
    %133 = vmatprep.mubr.f32.mxu0 0.0
    %134 = vmatmul.mubr.f32.gmra.mxu0 %v58
    %v135 = vpop.f32.mrf.mxu0
    %v136 = vadd.f32 %v52, %v135
    %v137 = vpop.f32.mrf.mxu0
    %138 = vmatprep.mubr.f32.mxu0 0.0
    %139 = vmatmul.mubr.f32.gmra.mxu0 %v61
    %v140 = vpop.f32.mrf.mxu0
    %v141 = vadd.f32 %v53, %v140
    %v142 = vpop.f32.mrf.mxu0
    %143 = vmatprep.mubr.f32.mxu0 0.0
    %144 = vmatmul.mubr.f32.gmra.mxu0 %v64
    %v145 = vpop.f32.mrf.mxu0
    %v146 = vadd.f32 %v54, %v145
    %v147 = vpop.f32.mrf.mxu0
    %148 = vmatprep.mubr.f32.mxu0 0.0
    %149 = vmatmul.mubr.f32.gmra.mxu0 %v67
    %v150 = vpop.f32.mrf.mxu0
    %v151 = vadd.f32 %v55, %v150
    %v152 = vpop.f32.mrf.mxu0
    %153 = vdwg.mxu0
    %v154 = vmax.f32 %v136, 0.0
    %v155 = vmax.f32 %v141, 0.0
    %v156 = vmax.f32 %v146, 0.0
    %v157 = vmax.f32 %v151, 0.0
    %s158 = scalar_lea.vmem [#allocation2], 48
    %v159 = vld [vmem:[%s158] sm:$0xff]
    %v160 = vld [vmem:[%s158 + $0x8] sm:$0xff]
    %s161 = scalar_lea.vmem [#allocation4], 48
    %v162 = vld [vmem:[%s161] sm:$0xff]
    %v163 = vld [vmem:[%s161 + $0x8] sm:$0xff]
    %vm164 = vcmask 261120
    %v166 = vsel %vm164, %v159, 0
    %v169 = vsel %vm164, %v160, 0
    %171 = vmatprep.subr.mxu0 0.0
    %172 = vmatpush1.msra.mxu0 0.0
    %173 = vmatprep.subr.mxu0 0.0
    %174 = vmatpush1.msra.mxu0 0.0
    %175 = vmatprep.subr.mxu0 0.0
    %176 = vmatpush1.msra.mxu0 0.0
    %177 = vmatprep.subr.mxu0 0.0
    %178 = vmatpush1.msra.mxu0 0.0
    %179 = vmatprep.subr.mxu0 0.0
    %180 = vmatpush1.msra.mxu0 0.0
    %181 = vmatprep.subr.mxu0 0.0
    %182 = vmatpush1.msra.mxu0 0.0
    %183 = vmatprep.subr.mxu0 0.0
    %184 = vmatpush1.msra.mxu0 0.0
    %185 = vmatprep.subr.mxu0 0.0
    %186 = vmatpush1.msra.mxu0 0.0
    %187 = vmatprep.subr.mxu0 0.0
    %188 = vmatpush1.msra.mxu0 0.0
    %189 = vmatprep.subr.mxu0 0.0
    %190 = vmatpush1.msra.mxu0 0.0
    %191 = vmatprep.subr.mxu0 0.0
    %192 = vmatpush1.msra.mxu0 0.0
    %193 = vmatprep.subr.mxu0 0.0
    %194 = vmatpush1.msra.mxu0 0.0
    %195 = vmatprep.subr.mxu0 0.0
    %196 = vmatpush1.msra.mxu0 %v157
    %197 = vmatprep.subr.mxu0 0.0
    %198 = vmatpush1.msra.mxu0 %v156
    %199 = vmatprep.subr.mxu0 0.0
    %200 = vmatpush1.msra.mxu0 %v155
    %201 = vmatprep.subr.mxu0 0.0
    %202 = vmatpush1.msra.mxu0 %v154
    %203 = vmatprep.subr.mxu0 0.0
    %204 = vmatpush2.msra.mxu0 0.0
    %205 = vmatprep.subr.mxu0 0.0
    %206 = vmatpush2.msra.mxu0 0.0
    %207 = vmatprep.subr.mxu0 0.0
    %208 = vmatpush2.msra.mxu0 0.0
    %209 = vmatprep.subr.mxu0 0.0
    %210 = vmatpush2.msra.mxu0 0.0
    %211 = vmatprep.subr.mxu0 0.0
    %212 = vmatpush2.msra.mxu0 0.0
    %213 = vmatprep.subr.mxu0 0.0
    %214 = vmatpush2.msra.mxu0 0.0
    %215 = vmatprep.subr.mxu0 0.0
    %216 = vmatpush2.msra.mxu0 0.0
    %217 = vmatprep.subr.mxu0 0.0
    %218 = vmatpush2.msra.mxu0 0.0
    %219 = vmatprep.subr.mxu0 0.0
    %220 = vmatpush2.msra.mxu0 0.0
    %221 = vmatprep.subr.mxu0 0.0
    %222 = vmatpush2.msra.mxu0 0.0
    %223 = vmatprep.subr.mxu0 0.0
    %224 = vmatpush2.msra.mxu0 0.0
    %225 = vmatprep.subr.mxu0 0.0
    %226 = vmatpush2.msra.mxu0 0.0
    %227 = vmatprep.subr.mxu0 0.0
    %228 = vmatpush2.msra.mxu0 0.0
    %229 = vmatprep.subr.mxu0 0.0
    %230 = vmatpush2.msra.mxu0 0.0
    %231 = vmatprep.subr.mxu0 0.0
    %232 = vmatpush2.msra.mxu0 0.0
    %233 = vmatprep.subr.mxu0 0.0
    %234 = vmatpush2.msra.mxu0 0.0
    %235 = vmatprep.mubr.f32.mxu0 0.0
    %236 = vmatmul.mubr.f32.gmra.mxu0 %v166
    %v237 = vpop.f32.mrf.mxu0
    %v238 = vadd.f32 %v162, %v237
    %v239 = vpop.f32.mrf.mxu0
    %240 = vmatprep.mubr.f32.mxu0 0.0
    %241 = vmatmul.mubr.f32.gmra.mxu0 %v169
    %v242 = vpop.f32.mrf.mxu0
    %v243 = vadd.f32 %v163, %v242
    %v244 = vpop.f32.mrf.mxu0
    %245 = vdwg.mxu0
    %v246 = vmul.f32 %v238, %v238
    %v247 = vrot.slane %v246, 4
    %v248 = vadd.f32 %v246, %v247
    %v249 = vrot.slane %v248, 2
    %v250 = vadd.f32 %v248, %v249
    %v251 = vrot.slane %v250, 1
    %v252 = vadd.f32 %v250, %v251
    %v253 = vrsqrt.pop %v252
    %v254 = vmul.f32 %v253, 2.0
    %v255 = vmul.f32 %v254, %v243
    %v256 = vadd.f32 %v255, %v47
    %s257 = scalar_lea.vmem [#allocation2], 96
    %v258 = vld [vmem:[%s257] sm:$0xff]
    %v259 = vld [vmem:[%s257 + $0x8] sm:$0xff]
    %v260 = vld [vmem:[%s257 + $0x10] sm:$0xff]
    %v261 = vld [vmem:[%s257 + $0x18] sm:$0xff]
    %s262 = scalar_lea.vmem [#allocation4], 96
    %v263 = vld [vmem:[%s262] sm:$0xff]
    %v264 = vld [vmem:[%s262 + $0x8] sm:$0xff]
    %v265 = vld [vmem:[%s262 + $0x10] sm:$0xff]
    %v266 = vld [vmem:[%s262 + $0x18] sm:$0xff]
    %vm267 = vcmask 64512
    %v269 = vsel %vm267, %v258, 0
    %v272 = vsel %vm267, %v259, 0
    %v275 = vsel %vm267, %v260, 0
    %v278 = vsel %vm267, %v261, 0
    %280 = vmatprep.subr.mxu0 0.0
    %281 = vmatpush1.msra.mxu0 0.0
    %282 = vmatprep.subr.mxu0 0.0
    %283 = vmatpush1.msra.mxu0 0.0
    %284 = vmatprep.subr.mxu0 0.0
    %285 = vmatpush1.msra.mxu0 0.0
    %286 = vmatprep.subr.mxu0 0.0
    %287 = vmatpush1.msra.mxu0 0.0
    %288 = vmatprep.subr.mxu0 0.0
    %289 = vmatpush1.msra.mxu0 0.0
    %290 = vmatprep.subr.mxu0 0.0
    %291 = vmatpush1.msra.mxu0 0.0
    %292 = vmatprep.subr.mxu0 0.0
    %293 = vmatpush1.msra.mxu0 0.0
    %294 = vmatprep.subr.mxu0 0.0
    %295 = vmatpush1.msra.mxu0 0.0
    %296 = vmatprep.subr.mxu0 0.0
    %297 = vmatpush1.msra.mxu0 0.0
    %298 = vmatprep.subr.mxu0 0.0
    %299 = vmatpush1.msra.mxu0 0.0
    %300 = vmatprep.subr.mxu0 0.0
    %301 = vmatpush1.msra.mxu0 0.0
    %302 = vmatprep.subr.mxu0 0.0
    %303 = vmatpush1.msra.mxu0 0.0
    %304 = vmatprep.subr.mxu0 0.0
    %305 = vmatpush1.msra.mxu0 0.0
    %306 = vmatprep.subr.mxu0 0.0
    %307 = vmatpush1.msra.mxu0 0.0
    %308 = vmatprep.subr.mxu0 0.0
    %309 = vmatpush1.msra.mxu0 0.0
    %310 = vmatprep.subr.mxu0 0.0
    %311 = vmatpush1.msra.mxu0 %v256
    %312 = vmatprep.subr.mxu0 0.0
    %313 = vmatpush2.msra.mxu0 0.0
    %314 = vmatprep.subr.mxu0 0.0
    %315 = vmatpush2.msra.mxu0 0.0
    %316 = vmatprep.subr.mxu0 0.0
    %317 = vmatpush2.msra.mxu0 0.0
    %318 = vmatprep.subr.mxu0 0.0
    %319 = vmatpush2.msra.mxu0 0.0
    %320 = vmatprep.subr.mxu0 0.0
    %321 = vmatpush2.msra.mxu0 0.0
    %322 = vmatprep.subr.mxu0 0.0
    %323 = vmatpush2.msra.mxu0 0.0
    %324 = vmatprep.subr.mxu0 0.0
    %325 = vmatpush2.msra.mxu0 0.0
    %326 = vmatprep.subr.mxu0 0.0
    %327 = vmatpush2.msra.mxu0 0.0
    %328 = vmatprep.subr.mxu0 0.0
    %329 = vmatpush2.msra.mxu0 0.0
    %330 = vmatprep.subr.mxu0 0.0
    %331 = vmatpush2.msra.mxu0 0.0
    %332 = vmatprep.subr.mxu0 0.0
    %333 = vmatpush2.msra.mxu0 0.0
    %334 = vmatprep.subr.mxu0 0.0
    %335 = vmatpush2.msra.mxu0 0.0
    %336 = vmatprep.subr.mxu0 0.0
    %337 = vmatpush2.msra.mxu0 0.0
    %338 = vmatprep.subr.mxu0 0.0
    %339 = vmatpush2.msra.mxu0 0.0
    %340 = vmatprep.subr.mxu0 0.0
    %341 = vmatpush2.msra.mxu0 0.0
    %342 = vmatprep.subr.mxu0 0.0
    %343 = vmatpush2.msra.mxu0 0.0
    %344 = vmatprep.mubr.f32.mxu0 0.0
    %345 = vmatmul.mubr.f32.gmra.mxu0 %v269
    %v346 = vpop.f32.mrf.mxu0
    %v347 = vadd.f32 %v263, %v346
    %v348 = vpop.f32.mrf.mxu0
    %349 = vmatprep.mubr.f32.mxu0 0.0
    %350 = vmatmul.mubr.f32.gmra.mxu0 %v272
    %v351 = vpop.f32.mrf.mxu0
    %v352 = vadd.f32 %v264, %v351
    %v353 = vpop.f32.mrf.mxu0
    %354 = vmatprep.mubr.f32.mxu0 0.0
    %355 = vmatmul.mubr.f32.gmra.mxu0 %v275
    %v356 = vpop.f32.mrf.mxu0
    %v357 = vadd.f32 %v265, %v356
    %v358 = vpop.f32.mrf.mxu0
    %359 = vmatprep.mubr.f32.mxu0 0.0
    %360 = vmatmul.mubr.f32.gmra.mxu0 %v278
    %v361 = vpop.f32.mrf.mxu0
    %v362 = vadd.f32 %v266, %v361
    %v363 = vpop.f32.mrf.mxu0
    %364 = vdwg.mxu0
    %v365 = vtanh.pop %v347
    %v366 = vtanh.pop %v352
    %v367 = vtanh.pop %v357
    %v368 = vtanh.pop %v362
    %s369 = scalar_lea.vmem [#allocation2], 144
    %v370 = vld [vmem:[%s369] sm:$0xff]
    %v371 = vld [vmem:[%s369 + $0x8] sm:$0xff]
    %v372 = vld [vmem:[%s369 + $0x10] sm:$0xff]
    %v373 = vld [vmem:[%s369 + $0x18] sm:$0xff]
    %s374 = scalar_lea.vmem [#allocation4], 144
    %v375 = vld [vmem:[%s374] sm:$0xff]
    %v376 = vld [vmem:[%s374 + $0x8] sm:$0xff]
    %v377 = vld [vmem:[%s374 + $0x10] sm:$0xff]
    %v378 = vld [vmem:[%s374 + $0x18] sm:$0xff]
    %v380 = vsel %vm164, %v370, 0
    %v383 = vsel %vm164, %v371, 0
    %v386 = vsel %vm164, %v372, 0
    %v389 = vsel %vm164, %v373, 0
    %391 = vmatprep.subr.mxu0 0.0
    %392 = vmatpush1.msra.mxu0 0.0
    %393 = vmatprep.subr.mxu0 0.0
    %394 = vmatpush1.msra.mxu0 0.0
    %395 = vmatprep.subr.mxu0 0.0
    %396 = vmatpush1.msra.mxu0 0.0
    %397 = vmatprep.subr.mxu0 0.0
    %398 = vmatpush1.msra.mxu0 0.0
    %399 = vmatprep.subr.mxu0 0.0
    %400 = vmatpush1.msra.mxu0 0.0
    %401 = vmatprep.subr.mxu0 0.0
    %402 = vmatpush1.msra.mxu0 0.0
    %403 = vmatprep.subr.mxu0 0.0
    %404 = vmatpush1.msra.mxu0 0.0
    %405 = vmatprep.subr.mxu0 0.0
    %406 = vmatpush1.msra.mxu0 0.0
    %407 = vmatprep.subr.mxu0 0.0
    %408 = vmatpush1.msra.mxu0 0.0
    %409 = vmatprep.subr.mxu0 0.0
    %410 = vmatpush1.msra.mxu0 0.0
    %411 = vmatprep.subr.mxu0 0.0
    %412 = vmatpush1.msra.mxu0 0.0
    %413 = vmatprep.subr.mxu0 0.0
    %414 = vmatpush1.msra.mxu0 0.0
    %415 = vmatprep.subr.mxu0 0.0
    %416 = vmatpush1.msra.mxu0 %v368
    %417 = vmatprep.subr.mxu0 0.0
    %418 = vmatpush1.msra.mxu0 %v367
    %419 = vmatprep.subr.mxu0 0.0
    %420 = vmatpush1.msra.mxu0 %v366
    %421 = vmatprep.subr.mxu0 0.0
    %422 = vmatpush1.msra.mxu0 %v365
    %423 = vmatprep.subr.mxu0 0.0
    %424 = vmatpush2.msra.mxu0 0.0
    %425 = vmatprep.subr.mxu0 0.0
    %426 = vmatpush2.msra.mxu0 0.0
    %427 = vmatprep.subr.mxu0 0.0
    %428 = vmatpush2.msra.mxu0 0.0
    %429 = vmatprep.subr.mxu0 0.0
    %430 = vmatpush2.msra.mxu0 0.0
    %431 = vmatprep.subr.mxu0 0.0
    %432 = vmatpush2.msra.mxu0 0.0
    %433 = vmatprep.subr.mxu0 0.0
    %434 = vmatpush2.msra.mxu0 0.0
    %435 = vmatprep.subr.mxu0 0.0
    %436 = vmatpush2.msra.mxu0 0.0
    %437 = vmatprep.subr.mxu0 0.0
    %438 = vmatpush2.msra.mxu0 0.0
    %439 = vmatprep.subr.mxu0 0.0
    %440 = vmatpush2.msra.mxu0 0.0
    %441 = vmatprep.subr.mxu0 0.0
    %442 = vmatpush2.msra.mxu0 0.0
    %443 = vmatprep.subr.mxu0 0.0
    %444 = vmatpush2.msra.mxu0 0.0
    %445 = vmatprep.subr.mxu0 0.0
    %446 = vmatpush2.msra.mxu0 0.0
    %447 = vmatprep.subr.mxu0 0.0
    %448 = vmatpush2.msra.mxu0 0.0
    %449 = vmatprep.subr.mxu0 0.0
    %450 = vmatpush2.msra.mxu0 0.0
    %451 = vmatprep.subr.mxu0 0.0
    %452 = vmatpush2.msra.mxu0 0.0
    %453 = vmatprep.subr.mxu0 0.0
    %454 = vmatpush2.msra.mxu0 0.0
    %455 = vmatprep.mubr.f32.mxu0 0.0
    %456 = vmatmul.mubr.f32.gmra.mxu0 %v380
    %v457 = vpop.f32.mrf.mxu0
    %v458 = vadd.f32 %v375, %v457
    %v459 = vpop.f32.mrf.mxu0
    %460 = vmatprep.mubr.f32.mxu0 0.0
    %461 = vmatmul.mubr.f32.gmra.mxu0 %v383
    %v462 = vpop.f32.mrf.mxu0
    %v463 = vadd.f32 %v376, %v462
    %v464 = vpop.f32.mrf.mxu0
    %465 = vmatprep.mubr.f32.mxu0 0.0
    %466 = vmatmul.mubr.f32.gmra.mxu0 %v386
    %v467 = vpop.f32.mrf.mxu0
    %v468 = vadd.f32 %v377, %v467
    %v469 = vpop.f32.mrf.mxu0
    %470 = vmatprep.mubr.f32.mxu0 0.0
    %471 = vmatmul.mubr.f32.gmra.mxu0 %v389
    %v472 = vpop.f32.mrf.mxu0
    %v473 = vadd.f32 %v378, %v472
    %v474 = vpop.f32.mrf.mxu0
    %475 = vdwg.mxu0
    %v476 = vtanh.pop %v458
    %v477 = vtanh.pop %v463
    %v478 = vtanh.pop %v468
    %v479 = vtanh.pop %v473
    %s480 = scalar_lea.vmem [#allocation2], 192
    %v481 = vld [vmem:[%s480] sm:$0xff]
    %v482 = vld [vmem:[%s480 + $0x8] sm:$0xff]
    %v483 = vld [vmem:[%s480 + $0x10] sm:$0xff]
    %v484 = vld [vmem:[%s480 + $0x18] sm:$0xff]
    %v485 = vld [vmem:[%s480 + $0x20] sm:$0xff]
    %v486 = vld [vmem:[%s480 + $0x28] sm:$0xff]
    %s487 = scalar_lea.vmem [#allocation4], 192
    %v488 = vld [vmem:[%s487] sm:$0xff]
    %v489 = vld [vmem:[%s487 + $0x8] sm:$0xff]
    %v490 = vld [vmem:[%s487 + $0x10] sm:$0xff]
    %v491 = vld [vmem:[%s487 + $0x18] sm:$0xff]
    %v492 = vld [vmem:[%s487 + $0x20] sm:$0xff]
    %v493 = vld [vmem:[%s487 + $0x28] sm:$0xff]
    %v495 = vsel %vm164, %v481, 0
    %v498 = vsel %vm164, %v482, 0
    %v501 = vsel %vm164, %v483, 0
    %v504 = vsel %vm164, %v484, 0
    %v507 = vsel %vm164, %v485, 0
    %v510 = vsel %vm164, %v486, 0
    %512 = vmatprep.subr.mxu0 0.0
    %513 = vmatpush1.msra.mxu0 0.0
    %514 = vmatprep.subr.mxu0 0.0
    %515 = vmatpush1.msra.mxu0 0.0
    %516 = vmatprep.subr.mxu0 0.0
    %517 = vmatpush1.msra.mxu0 0.0
    %518 = vmatprep.subr.mxu0 0.0
    %519 = vmatpush1.msra.mxu0 0.0
    %520 = vmatprep.subr.mxu0 0.0
    %521 = vmatpush1.msra.mxu0 0.0
    %522 = vmatprep.subr.mxu0 0.0
    %523 = vmatpush1.msra.mxu0 0.0
    %524 = vmatprep.subr.mxu0 0.0
    %525 = vmatpush1.msra.mxu0 0.0
    %526 = vmatprep.subr.mxu0 0.0
    %527 = vmatpush1.msra.mxu0 0.0
    %528 = vmatprep.subr.mxu0 0.0
    %529 = vmatpush1.msra.mxu0 0.0
    %530 = vmatprep.subr.mxu0 0.0
    %531 = vmatpush1.msra.mxu0 0.0
    %532 = vmatprep.subr.mxu0 0.0
    %533 = vmatpush1.msra.mxu0 0.0
    %534 = vmatprep.subr.mxu0 0.0
    %535 = vmatpush1.msra.mxu0 0.0
    %536 = vmatprep.subr.mxu0 0.0
    %537 = vmatpush1.msra.mxu0 %v479
    %538 = vmatprep.subr.mxu0 0.0
    %539 = vmatpush1.msra.mxu0 %v478
    %540 = vmatprep.subr.mxu0 0.0
    %541 = vmatpush1.msra.mxu0 %v477
    %542 = vmatprep.subr.mxu0 0.0
    %543 = vmatpush1.msra.mxu0 %v476
    %544 = vmatprep.subr.mxu0 0.0
    %545 = vmatpush2.msra.mxu0 0.0
    %546 = vmatprep.subr.mxu0 0.0
    %547 = vmatpush2.msra.mxu0 0.0
    %548 = vmatprep.subr.mxu0 0.0
    %549 = vmatpush2.msra.mxu0 0.0
    %550 = vmatprep.subr.mxu0 0.0
    %551 = vmatpush2.msra.mxu0 0.0
    %552 = vmatprep.subr.mxu0 0.0
    %553 = vmatpush2.msra.mxu0 0.0
    %554 = vmatprep.subr.mxu0 0.0
    %555 = vmatpush2.msra.mxu0 0.0
    %556 = vmatprep.subr.mxu0 0.0
    %557 = vmatpush2.msra.mxu0 0.0
    %558 = vmatprep.subr.mxu0 0.0
    %559 = vmatpush2.msra.mxu0 0.0
    %560 = vmatprep.subr.mxu0 0.0
    %561 = vmatpush2.msra.mxu0 0.0
    %562 = vmatprep.subr.mxu0 0.0
    %563 = vmatpush2.msra.mxu0 0.0
    %564 = vmatprep.subr.mxu0 0.0
    %565 = vmatpush2.msra.mxu0 0.0
    %566 = vmatprep.subr.mxu0 0.0
    %567 = vmatpush2.msra.mxu0 0.0
    %568 = vmatprep.subr.mxu0 0.0
    %569 = vmatpush2.msra.mxu0 0.0
    %570 = vmatprep.subr.mxu0 0.0
    %571 = vmatpush2.msra.mxu0 0.0
    %572 = vmatprep.subr.mxu0 0.0
    %573 = vmatpush2.msra.mxu0 0.0
    %574 = vmatprep.subr.mxu0 0.0
    %575 = vmatpush2.msra.mxu0 0.0
    %576 = vmatprep.mubr.f32.mxu0 0.0
    %577 = vmatmul.mubr.f32.gmra.mxu0 %v495
    %v578 = vpop.f32.mrf.mxu0
    %v579 = vadd.f32 %v488, %v578
    %v580 = vpop.f32.mrf.mxu0
    %581 = vmatprep.mubr.f32.mxu0 0.0
    %582 = vmatmul.mubr.f32.gmra.mxu0 %v498
    %v583 = vpop.f32.mrf.mxu0
    %v584 = vadd.f32 %v489, %v583
    %v585 = vpop.f32.mrf.mxu0
    %586 = vmatprep.mubr.f32.mxu0 0.0
    %587 = vmatmul.mubr.f32.gmra.mxu0 %v501
    %v588 = vpop.f32.mrf.mxu0
    %v589 = vadd.f32 %v490, %v588
    %v590 = vpop.f32.mrf.mxu0
    %591 = vmatprep.mubr.f32.mxu0 0.0
    %592 = vmatmul.mubr.f32.gmra.mxu0 %v504
    %v593 = vpop.f32.mrf.mxu0
    %v594 = vadd.f32 %v491, %v593
    %v595 = vpop.f32.mrf.mxu0
    %596 = vmatprep.mubr.f32.mxu0 0.0
    %597 = vmatmul.mubr.f32.gmra.mxu0 %v507
    %v598 = vpop.f32.mrf.mxu0
    %v599 = vadd.f32 %v492, %v598
    %v600 = vpop.f32.mrf.mxu0
    %601 = vmatprep.mubr.f32.mxu0 0.0
    %602 = vmatmul.mubr.f32.gmra.mxu0 %v510
    %v603 = vpop.f32.mrf.mxu0
    %v604 = vadd.f32 %v493, %v603
    %v605 = vpop.f32.mrf.mxu0
    %606 = vdwg.mxu0
    %s607 = scalar_lea.vmem [#allocation2], 240
    %v608 = vld [vmem:[%s607] sm:$0xff]
    %v609 = vld [vmem:[%s607 + $0x8] sm:$0xff]
    %v610 = vld [vmem:[%s607 + $0x10] sm:$0xff]
    %v611 = vld [vmem:[%s607 + $0x18] sm:$0xff]
    %v612 = vld [vmem:[%s607 + $0x20] sm:$0xff]
    %v613 = vld [vmem:[%s607 + $0x28] sm:$0xff]
    %v615 = vsel %vm267, %v608, 0
    %v618 = vsel %vm267, %v609, 0
    %v621 = vsel %vm267, %v610, 0
    %v624 = vsel %vm267, %v611, 0
    %v627 = vsel %vm267, %v612, 0
    %v630 = vsel %vm267, %v613, 0
    %632 = vmatprep.subr.mxu0 0.0
    %633 = vmatpush1.msra.mxu0 0.0
    %634 = vmatprep.subr.mxu0 0.0
    %635 = vmatpush1.msra.mxu0 0.0
    %636 = vmatprep.subr.mxu0 0.0
    %637 = vmatpush1.msra.mxu0 0.0
    %638 = vmatprep.subr.mxu0 0.0
    %639 = vmatpush1.msra.mxu0 0.0
    %640 = vmatprep.subr.mxu0 0.0
    %641 = vmatpush1.msra.mxu0 0.0
    %642 = vmatprep.subr.mxu0 0.0
    %643 = vmatpush1.msra.mxu0 0.0
    %644 = vmatprep.subr.mxu0 0.0
    %645 = vmatpush1.msra.mxu0 0.0
    %646 = vmatprep.subr.mxu0 0.0
    %647 = vmatpush1.msra.mxu0 0.0
    %648 = vmatprep.subr.mxu0 0.0
    %649 = vmatpush1.msra.mxu0 0.0
    %650 = vmatprep.subr.mxu0 0.0
    %651 = vmatpush1.msra.mxu0 0.0
    %652 = vmatprep.subr.mxu0 0.0
    %653 = vmatpush1.msra.mxu0 0.0
    %654 = vmatprep.subr.mxu0 0.0
    %655 = vmatpush1.msra.mxu0 0.0
    %656 = vmatprep.subr.mxu0 0.0
    %657 = vmatpush1.msra.mxu0 0.0
    %658 = vmatprep.subr.mxu0 0.0
    %659 = vmatpush1.msra.mxu0 0.0
    %660 = vmatprep.subr.mxu0 0.0
    %661 = vmatpush1.msra.mxu0 0.0
    %662 = vmatprep.subr.mxu0 0.0
    %663 = vmatpush1.msra.mxu0 %v256
    %664 = vmatprep.subr.mxu0 0.0
    %665 = vmatpush2.msra.mxu0 0.0
    %666 = vmatprep.subr.mxu0 0.0
    %667 = vmatpush2.msra.mxu0 0.0
    %668 = vmatprep.subr.mxu0 0.0
    %669 = vmatpush2.msra.mxu0 0.0
    %670 = vmatprep.subr.mxu0 0.0
    %671 = vmatpush2.msra.mxu0 0.0
    %672 = vmatprep.subr.mxu0 0.0
    %673 = vmatpush2.msra.mxu0 0.0
    %674 = vmatprep.subr.mxu0 0.0
    %675 = vmatpush2.msra.mxu0 0.0
    %676 = vmatprep.subr.mxu0 0.0
    %677 = vmatpush2.msra.mxu0 0.0
    %678 = vmatprep.subr.mxu0 0.0
    %679 = vmatpush2.msra.mxu0 0.0
    %680 = vmatprep.subr.mxu0 0.0
    %681 = vmatpush2.msra.mxu0 0.0
    %682 = vmatprep.subr.mxu0 0.0
    %683 = vmatpush2.msra.mxu0 0.0
    %684 = vmatprep.subr.mxu0 0.0
    %685 = vmatpush2.msra.mxu0 0.0
    %686 = vmatprep.subr.mxu0 0.0
    %687 = vmatpush2.msra.mxu0 0.0
    %688 = vmatprep.subr.mxu0 0.0
    %689 = vmatpush2.msra.mxu0 0.0
    %690 = vmatprep.subr.mxu0 0.0
    %691 = vmatpush2.msra.mxu0 0.0
    %692 = vmatprep.subr.mxu0 0.0
    %693 = vmatpush2.msra.mxu0 0.0
    %694 = vmatprep.subr.mxu0 0.0
    %695 = vmatpush2.msra.mxu0 0.0
    %696 = vmatprep.mubr.f32.mxu0 0.0
    %697 = vmatmul.mubr.f32.gmra.mxu0 %v615
    %v698 = vpop.f32.mrf.mxu0
    %v699 = vadd.f32 0.0, %v698
    %v700 = vpop.f32.mrf.mxu0
    %701 = vmatprep.mubr.f32.mxu0 0.0
    %702 = vmatmul.mubr.f32.gmra.mxu0 %v618
    %v703 = vpop.f32.mrf.mxu0
    %v704 = vadd.f32 0.0, %v703
    %v705 = vpop.f32.mrf.mxu0
    %706 = vmatprep.mubr.f32.mxu0 0.0
    %707 = vmatmul.mubr.f32.gmra.mxu0 %v621
    %v708 = vpop.f32.mrf.mxu0
    %v709 = vadd.f32 0.0, %v708
    %v710 = vpop.f32.mrf.mxu0
    %711 = vmatprep.mubr.f32.mxu0 0.0
    %712 = vmatmul.mubr.f32.gmra.mxu0 %v624
    %v713 = vpop.f32.mrf.mxu0
    %v714 = vadd.f32 0.0, %v713
    %v715 = vpop.f32.mrf.mxu0
    %716 = vmatprep.mubr.f32.mxu0 0.0
    %717 = vmatmul.mubr.f32.gmra.mxu0 %v627
    %v718 = vpop.f32.mrf.mxu0
    %v719 = vadd.f32 0.0, %v718
    %v720 = vpop.f32.mrf.mxu0
    %721 = vmatprep.mubr.f32.mxu0 0.0
    %722 = vmatmul.mubr.f32.gmra.mxu0 %v630
    %v723 = vpop.f32.mrf.mxu0
    %v724 = vadd.f32 0.0, %v723
    %v725 = vpop.f32.mrf.mxu0
    %726 = vdwg.mxu0
    %v727 = vmul.f32 %v699, %v579
    %v728 = vmul.f32 %v704, %v584
    %v729 = vmul.f32 %v709, %v589
    %v730 = vmul.f32 %v714, %v594
    %v731 = vmul.f32 %v719, %v599
    %v732 = vmul.f32 %v724, %v604
    %v733 = vadd.f32 %v727, %v730
    %v734 = vadd.f32 %v728, %v731
    %v735 = vadd.f32 %v729, %v732
    %s736 = scalar_lea.vmem [#allocation2], 288
    %v737 = vld [vmem:[%s736] sm:$0xff]
    %v738 = vld [vmem:[%s736 + $0x8] sm:$0xff]
    %v739 = vld [vmem:[%s736 + $0x10] sm:$0xff]
    %v740 = vld [vmem:[%s736 + $0x18] sm:$0xff]
    %s741 = scalar_lea.vmem [#allocation4], 240
    %v742 = vld [vmem:[%s741] sm:$0xff]
    %v743 = vld [vmem:[%s741 + $0x8] sm:$0xff]
    %v744 = vld [vmem:[%s741 + $0x10] sm:$0xff]
    %v745 = vld [vmem:[%s741 + $0x18] sm:$0xff]
    %vm746 = vcmask 195584
    %v748 = vsel %vm746, %v737, 0
    %v751 = vsel %vm746, %v738, 0
    %v754 = vsel %vm746, %v739, 0
    %v757 = vsel %vm746, %v740, 0
    %759 = vmatprep.subr.mxu0 0.0
    %760 = vmatpush1.msra.mxu0 0.0
    %761 = vmatprep.subr.mxu0 0.0
    %762 = vmatpush1.msra.mxu0 0.0
    %763 = vmatprep.subr.mxu0 0.0
    %764 = vmatpush1.msra.mxu0 0.0
    %765 = vmatprep.subr.mxu0 0.0
    %766 = vmatpush1.msra.mxu0 0.0
    %767 = vmatprep.subr.mxu0 0.0
    %768 = vmatpush1.msra.mxu0 0.0
    %769 = vmatprep.subr.mxu0 0.0
    %770 = vmatpush1.msra.mxu0 0.0
    %771 = vmatprep.subr.mxu0 0.0
    %772 = vmatpush1.msra.mxu0 0.0
    %773 = vmatprep.subr.mxu0 0.0
    %774 = vmatpush1.msra.mxu0 0.0
    %775 = vmatprep.subr.mxu0 0.0
    %776 = vmatpush1.msra.mxu0 0.0
    %777 = vmatprep.subr.mxu0 0.0
    %778 = vmatpush1.msra.mxu0 0.0
    %779 = vmatprep.subr.mxu0 0.0
    %780 = vmatpush1.msra.mxu0 0.0
    %781 = vmatprep.subr.mxu0 0.0
    %782 = vmatpush1.msra.mxu0 0.0
    %783 = vmatprep.subr.mxu0 0.0
    %784 = vmatpush1.msra.mxu0 0.0
    %785 = vmatprep.subr.mxu0 0.0
    %786 = vmatpush1.msra.mxu0 %v735
    %787 = vmatprep.subr.mxu0 0.0
    %788 = vmatpush1.msra.mxu0 %v734
    %789 = vmatprep.subr.mxu0 0.0
    %790 = vmatpush1.msra.mxu0 %v733
    %791 = vmatprep.subr.mxu0 0.0
    %792 = vmatpush2.msra.mxu0 0.0
    %793 = vmatprep.subr.mxu0 0.0
    %794 = vmatpush2.msra.mxu0 0.0
    %795 = vmatprep.subr.mxu0 0.0
    %796 = vmatpush2.msra.mxu0 0.0
    %797 = vmatprep.subr.mxu0 0.0
    %798 = vmatpush2.msra.mxu0 0.0
    %799 = vmatprep.subr.mxu0 0.0
    %800 = vmatpush2.msra.mxu0 0.0
    %801 = vmatprep.subr.mxu0 0.0
    %802 = vmatpush2.msra.mxu0 0.0
    %803 = vmatprep.subr.mxu0 0.0
    %804 = vmatpush2.msra.mxu0 0.0
    %805 = vmatprep.subr.mxu0 0.0
    %806 = vmatpush2.msra.mxu0 0.0
    %807 = vmatprep.subr.mxu0 0.0
    %808 = vmatpush2.msra.mxu0 0.0
    %809 = vmatprep.subr.mxu0 0.0
    %810 = vmatpush2.msra.mxu0 0.0
    %811 = vmatprep.subr.mxu0 0.0
    %812 = vmatpush2.msra.mxu0 0.0
    %813 = vmatprep.subr.mxu0 0.0
    %814 = vmatpush2.msra.mxu0 0.0
    %815 = vmatprep.subr.mxu0 0.0
    %816 = vmatpush2.msra.mxu0 0.0
    %817 = vmatprep.subr.mxu0 0.0
    %818 = vmatpush2.msra.mxu0 0.0
    %819 = vmatprep.subr.mxu0 0.0
    %820 = vmatpush2.msra.mxu0 0.0
    %821 = vmatprep.subr.mxu0 0.0
    %822 = vmatpush2.msra.mxu0 0.0
    %823 = vmatprep.mubr.f32.mxu0 0.0
    %824 = vmatmul.mubr.f32.gmra.mxu0 %v748
    %v825 = vpop.f32.mrf.mxu0
    %v826 = vadd.f32 %v742, %v825
    %v827 = vpop.f32.mrf.mxu0
    %828 = vmatprep.mubr.f32.mxu0 0.0
    %829 = vmatmul.mubr.f32.gmra.mxu0 %v751
    %v830 = vpop.f32.mrf.mxu0
    %v831 = vadd.f32 %v743, %v830
    %v832 = vpop.f32.mrf.mxu0
    %833 = vmatprep.mubr.f32.mxu0 0.0
    %834 = vmatmul.mubr.f32.gmra.mxu0 %v754
    %v835 = vpop.f32.mrf.mxu0
    %v836 = vadd.f32 %v744, %v835
    %v837 = vpop.f32.mrf.mxu0
    %838 = vmatprep.mubr.f32.mxu0 0.0
    %839 = vmatmul.mubr.f32.gmra.mxu0 %v757
    %v840 = vpop.f32.mrf.mxu0
    %v841 = vadd.f32 %v745, %v840
    %v842 = vpop.f32.mrf.mxu0
    %843 = vdwg.mxu0
    %v844 = vmax.f32 %v826, 0.0
    %v845 = vmax.f32 %v831, 0.0
    %v846 = vmax.f32 %v836, 0.0
    %v847 = vmax.f32 %v841, 0.0
    %s848 = scalar_lea.vmem [#allocation2], 336
    %v849 = vld [vmem:[%s848] sm:$0xff]
    %v850 = vld [vmem:[%s848 + $0x8] sm:$0xff]
    %s851 = scalar_lea.vmem [#allocation4], 288
    %v852 = vld [vmem:[%s851] sm:$0xff]
    %v853 = vld [vmem:[%s851 + $0x8] sm:$0xff]
    %v855 = vsel %vm164, %v849, 0
    %v858 = vsel %vm164, %v850, 0
    %860 = vmatprep.subr.mxu0 0.0
    %861 = vmatpush1.msra.mxu0 0.0
    %862 = vmatprep.subr.mxu0 0.0
    %863 = vmatpush1.msra.mxu0 0.0
    %864 = vmatprep.subr.mxu0 0.0
    %865 = vmatpush1.msra.mxu0 0.0
    %866 = vmatprep.subr.mxu0 0.0
    %867 = vmatpush1.msra.mxu0 0.0
    %868 = vmatprep.subr.mxu0 0.0
    %869 = vmatpush1.msra.mxu0 0.0
    %870 = vmatprep.subr.mxu0 0.0
    %871 = vmatpush1.msra.mxu0 0.0
    %872 = vmatprep.subr.mxu0 0.0
    %873 = vmatpush1.msra.mxu0 0.0
    %874 = vmatprep.subr.mxu0 0.0
    %875 = vmatpush1.msra.mxu0 0.0
    %876 = vmatprep.subr.mxu0 0.0
    %877 = vmatpush1.msra.mxu0 0.0
    %878 = vmatprep.subr.mxu0 0.0
    %879 = vmatpush1.msra.mxu0 0.0
    %880 = vmatprep.subr.mxu0 0.0
    %881 = vmatpush1.msra.mxu0 0.0
    %882 = vmatprep.subr.mxu0 0.0
    %883 = vmatpush1.msra.mxu0 0.0
    %884 = vmatprep.subr.mxu0 0.0
    %885 = vmatpush1.msra.mxu0 %v847
    %886 = vmatprep.subr.mxu0 0.0
    %887 = vmatpush1.msra.mxu0 %v846
    %888 = vmatprep.subr.mxu0 0.0
    %889 = vmatpush1.msra.mxu0 %v845
    %890 = vmatprep.subr.mxu0 0.0
    %891 = vmatpush1.msra.mxu0 %v844
    %892 = vmatprep.subr.mxu0 0.0
    %893 = vmatpush2.msra.mxu0 0.0
    %894 = vmatprep.subr.mxu0 0.0
    %895 = vmatpush2.msra.mxu0 0.0
    %896 = vmatprep.subr.mxu0 0.0
    %897 = vmatpush2.msra.mxu0 0.0
    %898 = vmatprep.subr.mxu0 0.0
    %899 = vmatpush2.msra.mxu0 0.0
    %900 = vmatprep.subr.mxu0 0.0
    %901 = vmatpush2.msra.mxu0 0.0
    %902 = vmatprep.subr.mxu0 0.0
    %903 = vmatpush2.msra.mxu0 0.0
    %904 = vmatprep.subr.mxu0 0.0
    %905 = vmatpush2.msra.mxu0 0.0
    %906 = vmatprep.subr.mxu0 0.0
    %907 = vmatpush2.msra.mxu0 0.0
    %908 = vmatprep.subr.mxu0 0.0
    %909 = vmatpush2.msra.mxu0 0.0
    %910 = vmatprep.subr.mxu0 0.0
    %911 = vmatpush2.msra.mxu0 0.0
    %912 = vmatprep.subr.mxu0 0.0
    %913 = vmatpush2.msra.mxu0 0.0
    %914 = vmatprep.subr.mxu0 0.0
    %915 = vmatpush2.msra.mxu0 0.0
    %916 = vmatprep.subr.mxu0 0.0
    %917 = vmatpush2.msra.mxu0 0.0
    %918 = vmatprep.subr.mxu0 0.0
    %919 = vmatpush2.msra.mxu0 0.0
    %920 = vmatprep.subr.mxu0 0.0
    %921 = vmatpush2.msra.mxu0 0.0
    %922 = vmatprep.subr.mxu0 0.0
    %923 = vmatpush2.msra.mxu0 0.0
    %924 = vmatprep.mubr.f32.mxu0 0.0
    %925 = vmatmul.mubr.f32.gmra.mxu0 %v855
    %v926 = vpop.f32.mrf.mxu0
    %v927 = vadd.f32 %v852, %v926
    %v928 = vpop.f32.mrf.mxu0
    %929 = vmatprep.mubr.f32.mxu0 0.0
    %930 = vmatmul.mubr.f32.gmra.mxu0 %v858
    %v931 = vpop.f32.mrf.mxu0
    %v932 = vadd.f32 %v853, %v931
    %v933 = vpop.f32.mrf.mxu0
    %934 = vdwg.mxu0
    %935 = vst [vmem:[%s4] sm:$0xff] %v927
    %936 = vst [vmem:[%s4 + $0x8] sm:$0xff] %v932
    // Predicated region
    $region26: #{forward.1} parent=1 // pred_check
      _
    $region27: #{forward.1} parent=1 // pred_check_branch
      %938 = sbr.rel (0) target = $region29
    $region28: #{forward.1} parent=1 // pred_region
      _
    $region29: #{forward.1} parent=1 // pred_fallthru
      _
    // Predicated region
    $region30: #{forward.1} parent=1 // pred_check
      _
    $region31: #{forward.1} parent=1 // pred_check_branch
      %940 = sbr.rel (0) target = $region33
    $region32: #{forward.1} parent=1 // pred_region
      _
    $region33: #{forward.1} parent=1 // pred_fallthru
      _
    %941 = vsyncpa [#allocation3], 1
    %942 = vsyncpa [#allocation5], 1

</llo_original>
